<compile_context>
chip_gen: v5e
topology: v5e:2x2
jax: 0.10.0
libtpu: 0.0.40
codegen_flags: <defaults>
</compile_context>

<pallas_src>
import math
from functools import partial

import numpy as np
import jax
import jax.numpy as jnp
from jax.experimental import pallas as pl
from jax.experimental.pallas import tpu as pltpu

D_MODEL = 32
MAX_LEN = 30  # PositionalEncoding1.__init__ overrides whatever max_len is passed


def build_pe_table(d_model: int = D_MODEL, max_len: int = MAX_LEN) -> jnp.ndarray:
    """Reproduces PositionalEncoding1.__init__ buffer `pe` (shape (max_len^2, d_model))."""
    div_term = 4.0 * np.exp(
        np.arange(d_model // 4, dtype=np.float32) * (-math.log(10000.0) / d_model)
    )[None, :]  # (1, d_model/4)
    # row indices (max_len^2) followed by col indices (max_len^2)
    pos = np.indices((max_len, max_len)).flatten().astype(np.float32)[:, None]

    n = max_len * max_len
    pe = np.zeros((n, d_model), dtype=np.float32)
    pe[:, 0::4] = np.sin(pos[:n] * div_term)
    pe[:, 1::4] = np.cos(pos[:n] * div_term)
    pe[:, 2::4] = np.sin(pos[n:] * div_term)
    pe[:, 3::4] = np.cos(pos[n:] * div_term)
    return jnp.asarray(pe)  # (900, 32) float32


def _add_pe_kernel(x_ref, pe_ref, o_ref):
    # x_ref / o_ref: (TB, LDp) lane-dense row tile; pe_ref: (1, LDp).
    # pe broadcasts over the row axis; plain VPU elementwise add.
    o_ref[...] = x_ref[...] + pe_ref[...]


_TARGET_BLOCK_BYTES = 4 * 1024 * 1024     # per-tile size at the measured roofline plateau
_SINGLE_BLOCK_MAX_BYTES = 512 * 1024      # below this a single full block is fine
_PALLAS_MIN_BYTES = 256 * 1024            # below this, XLA-fused add beats kernel overhead
_VMEM_LIMIT_BYTES = 32 * 1024 * 1024      # 2x in + 2x out tiles + pe; safe on v5e/v6e/v7x


def _pick_row_tile(B: int, row_bytes: int, itemsize: int) -> int:
    # dtype-aware sublane granularity: 8 rows (f32), 16 (bf16), 32 (int8/fp8)
    row_mult = max(8, 32 // max(itemsize, 1))
    total = B * row_bytes
    if B <= row_mult or total <= _SINGLE_BLOCK_MAX_BYTES:
        return B  # single full-extent block (always a legal block shape)
    tb = (_TARGET_BLOCK_BYTES // max(row_bytes, 1)) // row_mult * row_mult
    tb = max(row_mult, tb)
    if tb >= B:
        # prefer >= 2 grid steps so DMA-in of tile i+1 overlaps writeback of tile i
        tb = max(row_mult, (((B + 1) // 2) // row_mult) * row_mult)
    return min(tb, B)


@partial(jax.jit, static_argnames=("force_pallas",))
def positional_encoding1(x: jnp.ndarray, pe_full: jnp.ndarray, *, force_pallas: bool = False):
    """Forward of PositionalEncoding1: x + pe[:, :x.shape[1], :].  x: (B, L, D)."""
    B, L, D = x.shape
    itemsize = jnp.dtype(x.dtype).itemsize
    pe_slice = pe_full[:L, :].astype(x.dtype)  # static buffer slice (glue)

    # Small-size bypass: fixed pallas_call + DMA latency dwarfs a few KiB of work.
    if not force_pallas and B * L * D * itemsize < _PALLAS_MIN_BYTES:
        return x + pe_slice[None, :, :]

    # Lane-dense flatten; pad the last dim to a multiple of 128 so output stores
    # are full-lane (unmasked vst) for any L, not only L % 4 == 0.
    LD = L * D
    LDp = ((LD + 127) // 128) * 128
    x2 = x.reshape(B, LD)
    pe2 = pe_slice.reshape(1, LD)
    if LDp != LD:
        x2 = jnp.pad(x2, ((0, 0), (0, LDp - LD)))
        pe2 = jnp.pad(pe2, ((0, 0), (0, LDp - LD)))

    row_bytes = LDp * itemsize
    tb = _pick_row_tile(B, row_bytes, itemsize)
    grid = (pl.cdiv(B, tb),)

    out2 = pl.pallas_call(
        _add_pe_kernel,
        out_shape=jax.ShapeDtypeStruct((B, LDp), x.dtype),
        grid_spec=pltpu.PrefetchScalarGridSpec(
            num_scalar_prefetch=0,
            grid=grid,
            in_specs=[
                pl.BlockSpec((tb, LDp), lambda i: (i, 0)),
                # constant block index -> pe DMA'd once, stays resident in VMEM
                pl.BlockSpec((1, LDp), lambda i: (0, 0)),
            ],
            out_specs=pl.BlockSpec((tb, LDp), lambda i: (i, 0)),
        ),
        compiler_params=pltpu.CompilerParams(
            # TODO(synk): on v7x, shard the row-tile axis across the 2 TensorCores
            # with pltpu.CORE_PARALLEL / pl.core_map; plain "parallel" measurably
            # does not split work across cores.
            dimension_semantics=("parallel",),
            vmem_limit_bytes=_VMEM_LIMIT_BYTES,  # above v5e's 16 MiB scoped default
        ),
        # in-place add on x's reshaped buffer (realized under jit; callers can
        # additionally donate x at their own jit boundary for zero extra copies)
        input_output_aliases={0: 0},
    )(x2, pe2)

    if LDp != LD:
        out2 = out2[:, :LD]
    return out2.reshape(B, L, D)


if __name__ == "__main__":
    key = jax.random.PRNGKey(0)
    B, L, D = 2, 8, D_MODEL  # batch=2, seq=8, hidden=32
    x = jax.random.normal(key, (B, L, D), dtype=jnp.float32)

    pe_full = build_pe_table()  # (900, 32) deterministic buffer

    # pure-JAX reference
    ref = x + pe_full[None, :L, :]

    # Force the Pallas path (the demo is below the small-size bypass threshold).
    out = positional_encoding1(x, pe_full, force_pallas=True)
    out = jax.block_until_ready(out)

    assert out.shape == (B, L, D)
    np.testing.assert_allclose(np.asarray(out), np.asarray(ref), rtol=1e-6, atol=1e-6)

    # The small-size bypass path (XLA-fused add) must agree too.
    out_bypass = jax.block_until_ready(positional_encoding1(x, pe_full))
    np.testing.assert_allclose(np.asarray(out_bypass), np.asarray(ref), rtol=1e-6, atol=1e-6)

    print("KERNEL_OK")
</pallas_src>

<mosaic_0001>
module attributes {stable_mosaic.version = 11 : i64} {
  func.func @_add_pe_kernel(%arg0: i32, %arg1: memref<2x256xf32, #tpu.memory_space<vmem>>, %arg2: memref<1x256xf32, #tpu.memory_space<vmem>>, %arg3: memref<2x256xf32, #tpu.memory_space<vmem>>) attributes {dimension_semantics = [#tpu.dimension_semantics<parallel>], iteration_bounds = array<i64: 1>, scalar_prefetch = 0 : i64, scratch_operands = 0 : i64, tpu.core_type = #tpu.core_type<tc>, window_params = [{transform_indices = @transform_0, window_bounds = array<i64: 2, 256>}, {pipeline_mode = #tpu.pipeline_mode<synchronous>, transform_indices = @transform_1, window_bounds = array<i64: 1, 256>}, {transform_indices = @transform_2, window_bounds = array<i64: 2, 256>}]} {
    %c0 = arith.constant 0 : index
    %c0_0 = arith.constant 0 : index
    %0 = vector.load %arg1[%c0, %c0_0] : memref<2x256xf32, #tpu.memory_space<vmem>>, vector<2x256xf32>
    %c0_1 = arith.constant 0 : index
    %c0_2 = arith.constant 0 : index
    %1 = vector.load %arg2[%c0_1, %c0_2] : memref<1x256xf32, #tpu.memory_space<vmem>>, vector<1x256xf32>
    %2 = vector.broadcast %1 : vector<1x256xf32> to vector<2x256xf32>
    %3 = arith.addf %0, %2 : vector<2x256xf32>
    %c0_3 = arith.constant 0 : index
    %c0_4 = arith.constant 0 : index
    %4 = vector.load %arg3[%c0_3, %c0_4] : memref<2x256xf32, #tpu.memory_space<vmem>>, vector<2x256xf32>
    tpu.vector_store %arg3[%c0_3, %c0_4], %3 {strides = array<i32>} : memref<2x256xf32, #tpu.memory_space<vmem>>, vector<2x256xf32>,
    return
  }
  func.func @transform_0(%arg0: i32) -> (i32, i32) {
    %c0_i32 = arith.constant 0 : i32
    %c0_i32_0 = arith.constant 0 : i32
    return %arg0, %c0_i32 : i32, i32
  }
  func.func @transform_1(%arg0: i32) -> (i32, i32) {
    %c0_i32 = arith.constant 0 : i32
    %c0_i32_0 = arith.constant 0 : i32
    %c0_i32_1 = arith.constant 0 : i32
    return %c0_i32, %c0_i32_0 : i32, i32
  }
  func.func @transform_2(%arg0: i32) -> (i32, i32) {
    %c0_i32 = arith.constant 0 : i32
    %c0_i32_0 = arith.constant 0 : i32
    return %arg0, %c0_i32 : i32, i32
  }
}

</mosaic_0001>

<llo_original>
// kernel: positional_encoding1.1
$region0: #{positional_encoding1.1}
  #allocation0 [shape = 'u32[]', space=smem, size = 0x4, offset = 0x4, fixed_abs, tag = 'smem constant byte address 0x4 - core index']
  #allocation1 [shape = 'u32[72,128]{1,0:T(1,128)}', space=vmem, size = 0x9000, scoped, tag = 'internal scratch']
  %s0 = inlined_call_operand.vmem [shape: f32[2,256], index: 0, kind: input, shape index: {}, may-alias: {0,2}]
  %s1 = inlined_call_operand.vmem [shape: f32[1,256], index: 1, kind: input, shape index: {}]
  %s2 = inlined_call_operand.vmem [shape: f32[2,256], index: 2, kind: output, shape index: {}, may-alias: {0,2}]
  %s3 = sld [smem:[#allocation0]]
  $region18: #{positional_encoding1.1} parent=0
    _
  %s5 = ssub.s32 1, %s3
  %s6 = scalar_select 0, %s5, %s3
  // Predicated region
  $region2: #{positional_encoding1.1} parent=0 // pred_check
    _
  $region3: #{positional_encoding1.1} parent=0 // pred_check_branch
    %8 = sbr.rel (0) target = $region5
  $region4: #{positional_encoding1.1} parent=0 // pred_region
    _
  $region5: #{positional_encoding1.1} parent=0 // pred_fallthru
    _
  // Predicated region
  $region6: #{positional_encoding1.1} parent=0 // pred_check
    _
  $region7: #{positional_encoding1.1} parent=0 // pred_check_branch
    %10 = sbr.rel (0) target = $region9
  $region8: #{positional_encoding1.1} parent=0 // pred_region
    _
  $region9: #{positional_encoding1.1} parent=0 // pred_fallthru
    _
  %v11 = vld [vmem:[%s0] sm:$0xf]
  %v12 = vld [vmem:[%s1] sm:$0x3]
  %v14 = vperm.slane %v12, 0
  %v15 = vperm.slane %v12, 1
  %v16 = vrot.slane %v15, 6
  %vm17 = vcmask 1041408
  %v18 = vsel %vm17, %v14, %v16
  %v20 = vadd.f32 %v11, %v18
  %21 = vst [vmem:[%s2] sm:$0xf] %v20
  // Predicated region
  $region10: #{positional_encoding1.1} parent=0 // pred_check
    _
  $region11: #{positional_encoding1.1} parent=0 // pred_check_branch
    %23 = sbr.rel (0) target = $region13
  $region12: #{positional_encoding1.1} parent=0 // pred_region
    _
  $region13: #{positional_encoding1.1} parent=0 // pred_fallthru
    _
  // Predicated region
  $region14: #{positional_encoding1.1} parent=0 // pred_check
    _
  $region15: #{positional_encoding1.1} parent=0 // pred_check_branch
    %25 = sbr.rel (0) target = $region17
  $region16: #{positional_encoding1.1} parent=0 // pred_region
    _
  $region17: #{positional_encoding1.1} parent=0 // pred_fallthru
    _

</llo_original>
